<compile_context>
chip_gen: v6e
topology: v6e:2x2x1
jax: 0.10.0
libtpu: 0.0.40
codegen_flags: <defaults>
</compile_context>

<pallas_src>
import jax
import jax.numpy as jnp
from jax.experimental import pallas as pl
from jax.experimental.pallas import tpu as pltpu

LANES = 128
SUBLANES = 8
MIN_SPLIT_TILE = 512  # only split a single-step grid if each half is >= this


def _round_up(n, m):
    return ((n + m - 1) // m) * m


def mlp_kernel(x_ref, w1_ref, b1_ref, w2_ref, b2_ref, w3_ref, b3_ref, o_ref):
    # x arrives as f32 straight from HBM; cast to bf16 on the VPU just before
    # the MXU op (free under the DMA) instead of a separate wrapper-side pass.
    x = x_ref[...].astype(jnp.bfloat16)
    h1 = jnp.dot(x, w1_ref[...], preferred_element_type=jnp.float32)
    h1 = jnp.maximum(h1 + b1_ref[...], 0.0)

    # nn.Dropout(0.2) -> identity in eval mode.

    h2 = jnp.dot(h1.astype(jnp.bfloat16), w2_ref[...],
                 preferred_element_type=jnp.float32)
    h2 = jnp.maximum(h2 + b2_ref[...], 0.0)

    y = jnp.dot(h2.astype(jnp.bfloat16), w3_ref[...],
                preferred_element_type=jnp.float32)
    o_ref[...] = (y + b3_ref[...]).astype(o_ref.dtype)  # bf16 store


def prepare_params(params, *, lane_pad_output=False):
    """One-time parameter preprocessing (hoisted out of the hot path).

    Weights become bf16 MXU operands; biases stay f32 for the VPU epilogue.
    If lane_pad_output, the last layer is zero-padded to a 128-wide last dim
    (unmasked vst in-kernel at the cost of inflated HBM writeback bytes).
    """
    num_classes = params["w3"].shape[1]
    out_width = _round_up(num_classes, LANES) if lane_pad_output else num_classes

    w3 = params["w3"].astype(jnp.bfloat16)
    b3 = params["b3"].astype(jnp.float32)
    if out_width != num_classes:
        w3 = jnp.zeros((w3.shape[0], out_width), jnp.bfloat16).at[:, :num_classes].set(w3)
        b3 = jnp.zeros((1, out_width), jnp.float32).at[:, :num_classes].set(b3)

    return {
        "w1": params["w1"].astype(jnp.bfloat16),
        "b1": params["b1"].astype(jnp.float32),
        "w2": params["w2"].astype(jnp.bfloat16),
        "b2": params["b2"].astype(jnp.float32),
        "w3": w3,
        "b3": b3,
        "num_classes": num_classes,
        "out_width": out_width,
    }


def industrial_model_forward(x, prepared, *, batch_tile=2048):
    """x: (B, input_dim) f32. prepared: output of prepare_params()."""
    B, input_dim = x.shape
    h1_dim = prepared["w1"].shape[1]
    h2_dim = prepared["w2"].shape[1]
    num_classes = prepared["num_classes"]
    out_width = prepared["out_width"]

    # Tile selection: big tiles amortize the ~0.35us per-step overhead; small
    # batches collapse to a single grid step.  For batches large enough to be
    # worth splitting, keep >= 2 steps so the "parallel" axis shards across
    # both v7x TensorCores.
    b_round = _round_up(B, SUBLANES)
    tile = min(batch_tile, b_round)
    if tile == b_round and b_round >= 2 * MIN_SPLIT_TILE:
        tile = _round_up(b_round // 2, SUBLANES)

    B_pad = _round_up(B, tile)
    if B_pad != B:
        x = jnp.pad(x, ((0, B_pad - B), (0, 0)))

    grid = (B_pad // tile,)

    # Weights/biases are tiny: constant index_map keeps them resident in VMEM.
    def rep(shape):
        return pl.BlockSpec(shape, lambda i, _n=len(shape): (0,) * _n)

    flops = 2 * B_pad * (input_dim * h1_dim + h1_dim * h2_dim + h2_dim * out_width)
    bytes_accessed = (
        B_pad * input_dim * 4                               # streamed f32 input
        + B_pad * out_width * 2                             # bf16 output
        + (prepared["w1"].size + prepared["w2"].size + prepared["w3"].size) * 2
        + (prepared["b1"].size + prepared["b2"].size + prepared["b3"].size) * 4
    )
    cost = pl.CostEstimate(flops=flops, transcendentals=0,
                           bytes_accessed=bytes_accessed)

    out_padded = pl.pallas_call(
        mlp_kernel,
        out_shape=jax.ShapeDtypeStruct((B_pad, out_width), jnp.bfloat16),
        grid_spec=pl.GridSpec(
            grid=grid,
            in_specs=[
                pl.BlockSpec((tile, input_dim), lambda i: (i, 0)),
                rep((input_dim, h1_dim)),
                rep((1, h1_dim)),
                rep((h1_dim, h2_dim)),
                rep((1, h2_dim)),
                rep((h2_dim, out_width)),
                rep((1, out_width)),
            ],
            out_specs=pl.BlockSpec((tile, out_width), lambda i: (i, 0)),
        ),
        compiler_params=pltpu.CompilerParams(
            dimension_semantics=("parallel",),
        ),
        cost_estimate=cost,
    )(x, prepared["w1"], prepared["b1"], prepared["w2"], prepared["b2"],
      prepared["w3"], prepared["b3"])

    if B_pad != B or out_width != num_classes:
        out_padded = out_padded[:B, :num_classes]
    return out_padded


def init_params(key, input_dim, num_classes):
    """PyTorch nn.Linear-style init: U[-1/sqrt(fan_in), 1/sqrt(fan_in)]."""
    dims = [(input_dim, 64), (64, 32), (32, num_classes)]
    params = {}
    for idx, (fan_in, fan_out) in enumerate(dims, start=1):
        key, kw, kb = jax.random.split(key, 3)
        bound = 1.0 / jnp.sqrt(jnp.float32(fan_in))
        params[f"w{idx}"] = jax.random.uniform(
            kw, (fan_in, fan_out), jnp.float32, -bound, bound)
        params[f"b{idx}"] = jax.random.uniform(
            kb, (1, fan_out), jnp.float32, -bound, bound)
    return params


def reference_forward(x, params):
    h1 = jnp.maximum(x @ params["w1"] + params["b1"], 0.0)
    h2 = jnp.maximum(h1 @ params["w2"] + params["b2"], 0.0)
    return h2 @ params["w3"] + params["b3"]


if __name__ == "__main__":
    key = jax.random.PRNGKey(0)
    k_x, k_p = jax.random.split(key)

    B, input_dim, num_classes = 16, 32, 8
    x = jax.random.normal(k_x, (B, input_dim), jnp.float32)
    params = init_params(k_p, input_dim, num_classes)

    prepared = prepare_params(params)           # one-time, outside the hot path
    out = industrial_model_forward(x, prepared)
    out = jax.block_until_ready(out)

    ref = reference_forward(x, params)
    assert out.shape == (B, num_classes)
    # Tolerance relaxed vs the pure-f32 reference: bf16 MXU operands (f32
    # accumulation) plus a bf16 output store; K=32/64 keeps error ~1e-2.
    assert jnp.allclose(out.astype(jnp.float32), ref, atol=1e-1, rtol=1e-1), \
        "mismatch vs JAX reference"

    print("KERNEL_OK")
</pallas_src>

<mosaic_0001>
module attributes {stable_mosaic.version = 11 : i64} {
  func.func @mlp_kernel(%arg0: i32, %arg1: memref<16x32xf32, #tpu.memory_space<vmem>>, %arg2: memref<32x64xbf16, #tpu.memory_space<vmem>>, %arg3: memref<1x64xf32, #tpu.memory_space<vmem>>, %arg4: memref<64x32xbf16, #tpu.memory_space<vmem>>, %arg5: memref<1x32xf32, #tpu.memory_space<vmem>>, %arg6: memref<32x8xbf16, #tpu.memory_space<vmem>>, %arg7: memref<1x8xf32, #tpu.memory_space<vmem>>, %arg8: memref<16x8xbf16, #tpu.memory_space<vmem>>) attributes {dimension_semantics = [#tpu.dimension_semantics<parallel>], iteration_bounds = array<i64: 1>, scalar_prefetch = 0 : i64, scratch_operands = 0 : i64, tpu.core_type = #tpu.core_type<tc>, window_params = [{transform_indices = @transform_0, window_bounds = array<i64: 16, 32>}, {pipeline_mode = #tpu.pipeline_mode<synchronous>, transform_indices = @transform_1, window_bounds = array<i64: 32, 64>}, {pipeline_mode = #tpu.pipeline_mode<synchronous>, transform_indices = @transform_2, window_bounds = array<i64: 1, 64>}, {pipeline_mode = #tpu.pipeline_mode<synchronous>, transform_indices = @transform_3, window_bounds = array<i64: 64, 32>}, {pipeline_mode = #tpu.pipeline_mode<synchronous>, transform_indices = @transform_4, window_bounds = array<i64: 1, 32>}, {pipeline_mode = #tpu.pipeline_mode<synchronous>, transform_indices = @transform_5, window_bounds = array<i64: 32, 8>}, {pipeline_mode = #tpu.pipeline_mode<synchronous>, transform_indices = @transform_6, window_bounds = array<i64: 1, 8>}, {transform_indices = @transform_7, window_bounds = array<i64: 16, 8>}]} {
    %c0 = arith.constant 0 : index
    %c0_0 = arith.constant 0 : index
    %0 = vector.load %arg1[%c0, %c0_0] : memref<16x32xf32, #tpu.memory_space<vmem>>, vector<16x32xf32>
    %1 = arith.truncf %0 : vector<16x32xf32> to vector<16x32xbf16>
    %c0_1 = arith.constant 0 : index
    %c0_2 = arith.constant 0 : index
    %2 = vector.load %arg2[%c0_1, %c0_2] : memref<32x64xbf16, #tpu.memory_space<vmem>>, vector<32x64xbf16>
    %cst = arith.constant dense<0.000000e+00> : vector<16x64xf32>
    %3 = tpu.matmul %1, %2, %cst {dimension_numbers = #tpu.dot_dimension_numbers<[1], [0], [0], [1], [0, 0, 1, 1], [], []>} : vector<16x32xbf16>, vector<32x64xbf16>, vector<16x64xf32> -> vector<16x64xf32>
    %c0_3 = arith.constant 0 : index
    %c0_4 = arith.constant 0 : index
    %4 = vector.load %arg3[%c0_3, %c0_4] : memref<1x64xf32, #tpu.memory_space<vmem>>, vector<1x64xf32>
    %5 = vector.broadcast %4 : vector<1x64xf32> to vector<16x64xf32>
    %6 = arith.addf %3, %5 : vector<16x64xf32>
    %cst_5 = arith.constant 0.000000e+00 : f32
    %7 = vector.broadcast %cst_5 : f32 to vector<16x64xf32>
    %8 = arith.maximumf %6, %7 : vector<16x64xf32>
    %9 = arith.truncf %8 : vector<16x64xf32> to vector<16x64xbf16>
    %c0_6 = arith.constant 0 : index
    %c0_7 = arith.constant 0 : index
    %10 = vector.load %arg4[%c0_6, %c0_7] : memref<64x32xbf16, #tpu.memory_space<vmem>>, vector<64x32xbf16>
    %cst_8 = arith.constant dense<0.000000e+00> : vector<16x32xf32>
    %11 = tpu.matmul %9, %10, %cst_8 {dimension_numbers = #tpu.dot_dimension_numbers<[1], [0], [0], [1], [0, 0, 1, 1], [], []>} : vector<16x64xbf16>, vector<64x32xbf16>, vector<16x32xf32> -> vector<16x32xf32>
    %c0_9 = arith.constant 0 : index
    %c0_10 = arith.constant 0 : index
    %12 = vector.load %arg5[%c0_9, %c0_10] : memref<1x32xf32, #tpu.memory_space<vmem>>, vector<1x32xf32>
    %13 = vector.broadcast %12 : vector<1x32xf32> to vector<16x32xf32>
    %14 = arith.addf %11, %13 : vector<16x32xf32>
    %cst_11 = arith.constant 0.000000e+00 : f32
    %15 = vector.broadcast %cst_11 : f32 to vector<16x32xf32>
    %16 = arith.maximumf %14, %15 : vector<16x32xf32>
    %17 = arith.truncf %16 : vector<16x32xf32> to vector<16x32xbf16>
    %c0_12 = arith.constant 0 : index
    %c0_13 = arith.constant 0 : index
    %18 = vector.load %arg6[%c0_12, %c0_13] : memref<32x8xbf16, #tpu.memory_space<vmem>>, vector<32x8xbf16>
    %cst_14 = arith.constant dense<0.000000e+00> : vector<16x8xf32>
    %19 = tpu.matmul %17, %18, %cst_14 {dimension_numbers = #tpu.dot_dimension_numbers<[1], [0], [0], [1], [0, 0, 1, 1], [], []>} : vector<16x32xbf16>, vector<32x8xbf16>, vector<16x8xf32> -> vector<16x8xf32>
    %c0_15 = arith.constant 0 : index
    %c0_16 = arith.constant 0 : index
    %20 = vector.load %arg7[%c0_15, %c0_16] : memref<1x8xf32, #tpu.memory_space<vmem>>, vector<1x8xf32>
    %21 = vector.broadcast %20 : vector<1x8xf32> to vector<16x8xf32>
    %22 = arith.addf %19, %21 : vector<16x8xf32>
    %23 = arith.truncf %22 : vector<16x8xf32> to vector<16x8xbf16>
    %c0_17 = arith.constant 0 : index
    %c0_18 = arith.constant 0 : index
    %24 = vector.load %arg8[%c0_17, %c0_18] : memref<16x8xbf16, #tpu.memory_space<vmem>>, vector<16x8xbf16>
    tpu.vector_store %arg8[%c0_17, %c0_18], %23 {strides = array<i32>} : memref<16x8xbf16, #tpu.memory_space<vmem>>, vector<16x8xbf16>,
    return
  }
  func.func @transform_0(%arg0: i32) -> (i32, i32) {
    %c0_i32 = arith.constant 0 : i32
    %c0_i32_0 = arith.constant 0 : i32
    return %arg0, %c0_i32 : i32, i32
  }
  func.func @transform_1(%arg0: i32) -> (i32, i32) {
    %c0_i32 = arith.constant 0 : i32
    %c0_i32_0 = arith.constant 0 : i32
    %c0_i32_1 = arith.constant 0 : i32
    return %c0_i32, %c0_i32_0 : i32, i32
  }
  func.func @transform_2(%arg0: i32) -> (i32, i32) {
    %c0_i32 = arith.constant 0 : i32
    %c0_i32_0 = arith.constant 0 : i32
    %c0_i32_1 = arith.constant 0 : i32
    return %c0_i32, %c0_i32_0 : i32, i32
  }
  func.func @transform_3(%arg0: i32) -> (i32, i32) {
    %c0_i32 = arith.constant 0 : i32
    %c0_i32_0 = arith.constant 0 : i32
    %c0_i32_1 = arith.constant 0 : i32
    return %c0_i32, %c0_i32_0 : i32, i32
  }
  func.func @transform_4(%arg0: i32) -> (i32, i32) {
    %c0_i32 = arith.constant 0 : i32
    %c0_i32_0 = arith.constant 0 : i32
    %c0_i32_1 = arith.constant 0 : i32
    return %c0_i32, %c0_i32_0 : i32, i32
  }
  func.func @transform_5(%arg0: i32) -> (i32, i32) {
    %c0_i32 = arith.constant 0 : i32
    %c0_i32_0 = arith.constant 0 : i32
    %c0_i32_1 = arith.constant 0 : i32
    return %c0_i32, %c0_i32_0 : i32, i32
  }
  func.func @transform_6(%arg0: i32) -> (i32, i32) {
    %c0_i32 = arith.constant 0 : i32
    %c0_i32_0 = arith.constant 0 : i32
    %c0_i32_1 = arith.constant 0 : i32
    return %c0_i32, %c0_i32_0 : i32, i32
  }
  func.func @transform_7(%arg0: i32) -> (i32, i32) {
    %c0_i32 = arith.constant 0 : i32
    %c0_i32_0 = arith.constant 0 : i32
    return %arg0, %c0_i32 : i32, i32
  }
}

</mosaic_0001>

<llo_original>
// kernel: tpu_custom_call.1
$region0: #{tpu_custom_call.1}
  #allocation0 [shape = 'u32[]', space=smem, size = 0x4, offset = 0x4, fixed_abs, tag = 'smem constant byte address 0x4 - core index']
  #allocation1 [shape = 'u32[144,128]{1,0:T(1,128)}', space=vmem, size = 0x12000, scoped, tag = 'internal scratch']
  %s0 = inlined_call_operand.vmem [shape: f32[16,32], index: 0, kind: input, shape index: {}]
  %s1 = inlined_call_operand.vmem [shape: bf16[32,64], index: 1, kind: input, shape index: {}]
  %s2 = inlined_call_operand.vmem [shape: f32[1,64], index: 2, kind: input, shape index: {}]
  %s3 = inlined_call_operand.vmem [shape: bf16[64,32], index: 3, kind: input, shape index: {}]
  %s4 = inlined_call_operand.vmem [shape: f32[1,32], index: 4, kind: input, shape index: {}]
  %s5 = inlined_call_operand.vmem [shape: bf16[32,8], index: 5, kind: input, shape index: {}]
  %s6 = inlined_call_operand.vmem [shape: f32[1,8], index: 6, kind: input, shape index: {}]
  %s7 = inlined_call_operand.vmem [shape: bf16[16,8], index: 7, kind: output, shape index: {}]
  %s8 = sld [smem:[#allocation0]]
  $region38: #{tpu_custom_call.1} parent=0
    _
  %s10 = ssub.s32 1, %s8
  %s11 = scalar_select 0, %s10, %s8
  // Predicated region
  $region2: #{tpu_custom_call.1} parent=0 // pred_check
    _
  $region3: #{tpu_custom_call.1} parent=0 // pred_check_branch
    %13 = sbr.rel (0) target = $region5
  $region4: #{tpu_custom_call.1} parent=0 // pred_region
    _
  $region5: #{tpu_custom_call.1} parent=0 // pred_fallthru
    _
  // Predicated region
  $region6: #{tpu_custom_call.1} parent=0 // pred_check
    _
  $region7: #{tpu_custom_call.1} parent=0 // pred_check_branch
    %15 = sbr.rel (0) target = $region9
  $region8: #{tpu_custom_call.1} parent=0 // pred_region
    _
  $region9: #{tpu_custom_call.1} parent=0 // pred_fallthru
    _
  // Predicated region
  $region10: #{tpu_custom_call.1} parent=0 // pred_check
    _
  $region11: #{tpu_custom_call.1} parent=0 // pred_check_branch
    %17 = sbr.rel (0) target = $region13
  $region12: #{tpu_custom_call.1} parent=0 // pred_region
    _
  $region13: #{tpu_custom_call.1} parent=0 // pred_fallthru
    _
  // Predicated region
  $region14: #{tpu_custom_call.1} parent=0 // pred_check
    _
  $region15: #{tpu_custom_call.1} parent=0 // pred_check_branch
    %19 = sbr.rel (0) target = $region17
  $region16: #{tpu_custom_call.1} parent=0 // pred_region
    _
  $region17: #{tpu_custom_call.1} parent=0 // pred_fallthru
    _
  // Predicated region
  $region18: #{tpu_custom_call.1} parent=0 // pred_check
    _
  $region19: #{tpu_custom_call.1} parent=0 // pred_check_branch
    %21 = sbr.rel (0) target = $region21
  $region20: #{tpu_custom_call.1} parent=0 // pred_region
    _
  $region21: #{tpu_custom_call.1} parent=0 // pred_fallthru
    _
  // Predicated region
  $region22: #{tpu_custom_call.1} parent=0 // pred_check
    _
  $region23: #{tpu_custom_call.1} parent=0 // pred_check_branch
    %23 = sbr.rel (0) target = $region25
  $region24: #{tpu_custom_call.1} parent=0 // pred_region
    _
  $region25: #{tpu_custom_call.1} parent=0 // pred_fallthru
    _
  // Predicated region
  $region26: #{tpu_custom_call.1} parent=0 // pred_check
    _
  $region27: #{tpu_custom_call.1} parent=0 // pred_check_branch
    %25 = sbr.rel (0) target = $region29
  $region28: #{tpu_custom_call.1} parent=0 // pred_region
    _
  $region29: #{tpu_custom_call.1} parent=0 // pred_fallthru
    _
  %v27 = vld [vmem:[%s0] sm:$0xff]
  %v28 = vld [vmem:[%s0 + $0x8] sm:$0xff]
  %v29 = vpack.c.bf16 %v28, %v27
  %v30 = vld [vmem:[%s1] sm:$0xf]
  %v31 = vld [vmem:[%s1 + $0x4] sm:$0xf]
  %v32 = vld [vmem:[%s1 + $0x8] sm:$0xf]
  %v33 = vld [vmem:[%s1 + $0xc] sm:$0xf]
  %v34 = vld [vmem:[%s2] sm:$0x1]
  %v36 = vlaneseq
  %v37 = vshrl.u32 %v36, 7
  %v38 = vsub.s32 0, %v37
  %v39 = vrot.slane %v34, %v38
  %v45 = vunpack.c.l.b16 %v30
  %v46 = vunpack.c.l.b16 %v31
  %v47 = vunpack.c.l.b16 %v32
  %v48 = vunpack.c.l.b16 %v33
  %v49 = vpack.c.b16 %v46, %v45
  %v50 = vpack.c.b16 %v48, %v47
  %vm53 = vcmask 261120
  %v55 = vsel %vm53, %v29, 0
  %57 = vmatprep.subr.bf16.mxu0 0
  %58 = vmatpush1.bf16.msra.mxu0 0
  %59 = vmatprep.subr.bf16.mxu0 0
  %60 = vmatpush1.bf16.msra.mxu0 0
  %61 = vmatprep.subr.bf16.mxu0 0
  %62 = vmatpush1.bf16.msra.mxu0 0
  %63 = vmatprep.subr.bf16.mxu0 0
  %64 = vmatpush1.bf16.msra.mxu0 0
  %65 = vmatprep.subr.bf16.mxu0 0
  %66 = vmatpush1.bf16.msra.mxu0 0
  %67 = vmatprep.subr.bf16.mxu0 0
  %68 = vmatpush1.bf16.msra.mxu0 0
  %69 = vmatprep.subr.bf16.mxu0 0
  %70 = vmatpush1.bf16.msra.mxu0 %v50
  %71 = vmatprep.subr.bf16.mxu0 0
  %72 = vmatpush1.bf16.msra.mxu0 %v49
  %73 = vmatprep.subr.bf16.mxu0 0
  %74 = vmatpush2.bf16.msra.mxu0 0
  %75 = vmatprep.subr.bf16.mxu0 0
  %76 = vmatpush2.bf16.msra.mxu0 0
  %77 = vmatprep.subr.bf16.mxu0 0
  %78 = vmatpush2.bf16.msra.mxu0 0
  %79 = vmatprep.subr.bf16.mxu0 0
  %80 = vmatpush2.bf16.msra.mxu0 0
  %81 = vmatprep.subr.bf16.mxu0 0
  %82 = vmatpush2.bf16.msra.mxu0 0
  %83 = vmatprep.subr.bf16.mxu0 0
  %84 = vmatpush2.bf16.msra.mxu0 0
  %85 = vmatprep.subr.bf16.mxu0 0
  %86 = vmatpush2.bf16.msra.mxu0 0
  %87 = vmatprep.subr.bf16.mxu0 0
  %88 = vmatpush2.bf16.msra.mxu0 0
  %89 = vmatprep.mubr.bf16.mxu0 0
  %90 = vmatmul.mubr.bf16.gmra.mxu0 %v55
  %v91 = vpop.f32.mrf.mxu0
  %v92 = vadd.f32 %v39, %v91
  %v93 = vpop.f32.mrf.mxu0
  %v94 = vpop.f32.mrf.mxu0
  %v95 = vadd.f32 %v39, %v94
  %v96 = vpop.f32.mrf.mxu0
  %97 = vdwg.mxu0
  %v98 = vmax.f32 %v92, 0.0
  %v99 = vmax.f32 %v95, 0.0
  %v100 = vpack.c.bf16 %v99, %v98
  %v101 = vld [vmem:[%s3] sm:$0xf]
  %v102 = vld [vmem:[%s3 + $0x4] sm:$0xf]
  %v103 = vld [vmem:[%s3 + $0x8] sm:$0xf]
  %v104 = vld [vmem:[%s3 + $0xc] sm:$0xf]
  %v105 = vld [vmem:[%s3 + $0x10] sm:$0xf]
  %v106 = vld [vmem:[%s3 + $0x14] sm:$0xf]
  %v107 = vld [vmem:[%s3 + $0x18] sm:$0xf]
  %v108 = vld [vmem:[%s3 + $0x1c] sm:$0xf]
  %v109 = vld [vmem:[%s4] sm:$0x1]
  %v111 = vlaneseq
  %v112 = vshrl.u32 %v111, 7
  %v113 = vsub.s32 0, %v112
  %v114 = vrot.slane %v109, %v113
  %v124 = vunpack.c.l.b16 %v101
  %v125 = vunpack.c.l.b16 %v102
  %v126 = vunpack.c.l.b16 %v103
  %v127 = vunpack.c.l.b16 %v104
  %v128 = vunpack.c.l.b16 %v105
  %v129 = vunpack.c.l.b16 %v106
  %v130 = vunpack.c.l.b16 %v107
  %v131 = vunpack.c.l.b16 %v108
  %v132 = vpack.c.b16 %v125, %v124
  %v133 = vpack.c.b16 %v127, %v126
  %v134 = vpack.c.b16 %v129, %v128
  %v135 = vpack.c.b16 %v131, %v130
  %vm140 = vcmask 523264
  %v142 = vsel %vm140, %v100, 0
  %144 = vmatprep.subr.bf16.mxu0 0
  %145 = vmatpush1.bf16.msra.mxu0 0
  %146 = vmatprep.subr.bf16.mxu0 0
  %147 = vmatpush1.bf16.msra.mxu0 0
  %148 = vmatprep.subr.bf16.mxu0 0
  %149 = vmatpush1.bf16.msra.mxu0 0
  %150 = vmatprep.subr.bf16.mxu0 0
  %151 = vmatpush1.bf16.msra.mxu0 0
  %152 = vmatprep.subr.bf16.mxu0 0
  %153 = vmatpush1.bf16.msra.mxu0 %v135
  %154 = vmatprep.subr.bf16.mxu0 0
  %155 = vmatpush1.bf16.msra.mxu0 %v134
  %156 = vmatprep.subr.bf16.mxu0 0
  %157 = vmatpush1.bf16.msra.mxu0 %v133
  %158 = vmatprep.subr.bf16.mxu0 0
  %159 = vmatpush1.bf16.msra.mxu0 %v132
  %160 = vmatprep.subr.bf16.mxu0 0
  %161 = vmatpush2.bf16.msra.mxu0 0
  %162 = vmatprep.subr.bf16.mxu0 0
  %163 = vmatpush2.bf16.msra.mxu0 0
  %164 = vmatprep.subr.bf16.mxu0 0
  %165 = vmatpush2.bf16.msra.mxu0 0
  %166 = vmatprep.subr.bf16.mxu0 0
  %167 = vmatpush2.bf16.msra.mxu0 0
  %168 = vmatprep.subr.bf16.mxu0 0
  %169 = vmatpush2.bf16.msra.mxu0 0
  %170 = vmatprep.subr.bf16.mxu0 0
  %171 = vmatpush2.bf16.msra.mxu0 0
  %172 = vmatprep.subr.bf16.mxu0 0
  %173 = vmatpush2.bf16.msra.mxu0 0
  %174 = vmatprep.subr.bf16.mxu0 0
  %175 = vmatpush2.bf16.msra.mxu0 0
  %176 = vmatprep.mubr.bf16.mxu0 0
  %177 = vmatmul.mubr.bf16.gmra.mxu0 %v142
  %v178 = vpop.f32.mrf.mxu0
  %v179 = vadd.f32 %v114, %v178
  %v180 = vpop.f32.mrf.mxu0
  %v181 = vpop.f32.mrf.mxu0
  %v182 = vadd.f32 %v114, %v181
  %v183 = vpop.f32.mrf.mxu0
  %184 = vdwg.mxu0
  %v185 = vmax.f32 %v179, 0.0
  %v186 = vmax.f32 %v182, 0.0
  %v187 = vpack.c.bf16 %v186, %v185
  %v188 = vld [vmem:[%s5] sm:$0xf]
  %v189 = vld [vmem:[%s5 + $0x4] sm:$0xf]
  %v190 = vld [vmem:[%s5 + $0x8] sm:$0xf]
  %v191 = vld [vmem:[%s5 + $0xc] sm:$0xf]
  %v192 = vld [vmem:[%s6] sm:$0x1]
  %v194 = vlaneseq
  %v195 = vshrl.u32 %v194, 7
  %v196 = vsub.s32 0, %v195
  %v197 = vrot.slane %v192, %v196
  %v203 = vunpack.c.l.b16 %v188
  %v204 = vunpack.c.l.b16 %v189
  %v205 = vunpack.c.l.b16 %v190
  %v206 = vunpack.c.l.b16 %v191
  %v207 = vpack.c.b16 %v204, %v203
  %v208 = vpack.c.b16 %v206, %v205
  %v212 = vsel %vm53, %v187, 0
  %214 = vmatprep.subr.bf16.mxu0 0
  %215 = vmatpush1.bf16.msra.mxu0 0
  %216 = vmatprep.subr.bf16.mxu0 0
  %217 = vmatpush1.bf16.msra.mxu0 0
  %218 = vmatprep.subr.bf16.mxu0 0
  %219 = vmatpush1.bf16.msra.mxu0 0
  %220 = vmatprep.subr.bf16.mxu0 0
  %221 = vmatpush1.bf16.msra.mxu0 0
  %222 = vmatprep.subr.bf16.mxu0 0
  %223 = vmatpush1.bf16.msra.mxu0 0
  %224 = vmatprep.subr.bf16.mxu0 0
  %225 = vmatpush1.bf16.msra.mxu0 0
  %226 = vmatprep.subr.bf16.mxu0 0
  %227 = vmatpush1.bf16.msra.mxu0 %v208
  %228 = vmatprep.subr.bf16.mxu0 0
  %229 = vmatpush1.bf16.msra.mxu0 %v207
  %230 = vmatprep.subr.bf16.mxu0 0
  %231 = vmatpush2.bf16.msra.mxu0 0
  %232 = vmatprep.subr.bf16.mxu0 0
  %233 = vmatpush2.bf16.msra.mxu0 0
  %234 = vmatprep.subr.bf16.mxu0 0
  %235 = vmatpush2.bf16.msra.mxu0 0
  %236 = vmatprep.subr.bf16.mxu0 0
  %237 = vmatpush2.bf16.msra.mxu0 0
  %238 = vmatprep.subr.bf16.mxu0 0
  %239 = vmatpush2.bf16.msra.mxu0 0
  %240 = vmatprep.subr.bf16.mxu0 0
  %241 = vmatpush2.bf16.msra.mxu0 0
  %242 = vmatprep.subr.bf16.mxu0 0
  %243 = vmatpush2.bf16.msra.mxu0 0
  %244 = vmatprep.subr.bf16.mxu0 0
  %245 = vmatpush2.bf16.msra.mxu0 0
  %246 = vmatprep.mubr.bf16.mxu0 0
  %247 = vmatmul.mubr.bf16.gmra.mxu0 %v212
  %v248 = vpop.f32.mrf.mxu0
  %v249 = vadd.f32 %v197, %v248
  %v250 = vpop.f32.mrf.mxu0
  %v251 = vpop.f32.mrf.mxu0
  %v252 = vadd.f32 %v197, %v251
  %v253 = vpop.f32.mrf.mxu0
  %254 = vdwg.mxu0
  %v255 = vpack.c.bf16 %v252, %v249
  %v257 = vunpack.c.l.b16 %v255
  %v258 = vunpack.c.h.b16 %v255
  %v259 = vpack.c.b16 %v257, %v257
  %v260 = vpack.c.b16 %v258, %v258
  %vm263 = vcmask 60416
  %264 = vst.msk [vmem:[%s7] sm:$0xf] %vm263, %v259
  %265 = vst.msk [vmem:[%s7 + $0x4] sm:$0xf] %vm263, %v260
  // Predicated region
  $region30: #{tpu_custom_call.1} parent=0 // pred_check
    _
  $region31: #{tpu_custom_call.1} parent=0 // pred_check_branch
    %267 = sbr.rel (0) target = $region33
  $region32: #{tpu_custom_call.1} parent=0 // pred_region
    _
  $region33: #{tpu_custom_call.1} parent=0 // pred_fallthru
    _
  // Predicated region
  $region34: #{tpu_custom_call.1} parent=0 // pred_check
    _
  $region35: #{tpu_custom_call.1} parent=0 // pred_check_branch
    %269 = sbr.rel (0) target = $region37
  $region36: #{tpu_custom_call.1} parent=0 // pred_region
    _
  $region37: #{tpu_custom_call.1} parent=0 // pred_fallthru
    _

</llo_original>
